<compile_context>
chip_gen: v7x
topology: tpu7x:2x2x1
jax: 0.10.0
libtpu: 0.0.40
codegen_flags: <defaults>
</compile_context>

<pallas_src>
import jax
import jax.numpy as jnp
from jax.experimental import pallas as pl
from jax.experimental.pallas import tpu as pltpu


# Cap on the statically-unrolled per-channel transpose loop inside the kernel
# (bounds compile-time IR size; 64 channels per block is already multi-MiB for
# realistic plane sizes).
_MAX_CHANNELS_PER_BLOCK = 64


def _make_patchify_kernel(ct):
    def _patchify_kernel(x_ref, o_ref):
        # x_ref block: (1, ct, H, W)   o_ref block: (1, ct, W, H)
        # out[0, c, w, h] = x[0, c, h, w]  -- a batch of 2-D XLU transposes.
        for c in range(ct):  # static unroll; ct is a compile-time constant
            o_ref[0, c, :, :] = jnp.transpose(x_ref[0, c, :, :], (1, 0))

    return _patchify_kernel


def _choose_channel_tile(B, C, H, W, itemsize, vmem_budget_bytes):
    """Largest divisor of C whose double-buffered in+out blocks fit the budget."""
    # per grid step VMEM = 2 buffers * (input block + output block)
    #                    = 4 * ct * H * W * itemsize
    per_channel_bytes = 4 * H * W * itemsize
    max_ct = max(1, vmem_budget_bytes // per_channel_bytes)
    max_ct = min(max_ct, _MAX_CHANNELS_PER_BLOCK)

    ct = 1
    for d in range(1, C + 1):
        if C % d == 0 and d <= max_ct:
            ct = d

    # v7x has 2 TensorCores: keep at least 2 parallel grid steps when possible
    # (no-op on v5e/v6e, which have a single TC).
    if B * (C // ct) < 2 and ct > 1:
        ct = max(d for d in range(1, ct) if C % d == 0)
    return ct


def patchify_pallas(x, patch_size, stride, *, vmem_budget_bytes=24 << 20):
    assert patch_size == stride, "Patch size and stride should be equal"
    B, C, H, W = x.shape
    assert H % patch_size == 0 and W % patch_size == 0

    itemsize = jnp.dtype(x.dtype).itemsize
    ct = _choose_channel_tile(B, C, H, W, itemsize, vmem_budget_bytes)

    block_bytes = 4 * ct * H * W * itemsize          # double-buffered in + out
    vmem_limit = int(max(32 << 20, block_bytes + (4 << 20)))
    bytes_accessed = 2 * B * C * H * W * itemsize    # read once + write once

    out4 = pl.pallas_call(
        _make_patchify_kernel(ct),
        out_shape=jax.ShapeDtypeStruct((B, C, W, H), x.dtype),
        grid=(B, C // ct),
        in_specs=[pl.BlockSpec((1, ct, H, W), lambda b, c: (b, c, 0, 0))],
        out_specs=pl.BlockSpec((1, ct, W, H), lambda b, c: (b, c, 0, 0)),
        compiler_params=pltpu.CompilerParams(
            dimension_semantics=("parallel", "parallel"),
            vmem_limit_bytes=vmem_limit,
        ),
        cost_estimate=pl.CostEstimate(
            flops=0,
            transcendentals=0,
            bytes_accessed=bytes_accessed,
        ),
    )(x)

    # (B, C, W, H) -> (B, C*W, H): contiguous merge of dims 1 and 2, free in XLA.
    return out4.reshape(B, C * W, H)


def patchify_reference(x, p):
    """Literal emulation of the PyTorch unfold/unfold/rearrange in plain JAX."""
    B, C, H, W = x.shape
    n_h, n_w = H // p, W // p
    # x.unfold(2, p, p): t1[b,c,i,w,a] = x[b,c,i*p+a,w]
    t = x.reshape(B, C, n_h, p, W).transpose(0, 1, 2, 4, 3)
    # .unfold(3, p, p): t2[b,c,i,j,a,b2] = t1[b,c,i,j*p+b2,a]
    t = t.reshape(B, C, n_h, n_w, p, p).transpose(0, 1, 2, 3, 5, 4)
    # einops 'b c h n_h w n_w -> b (c n_h n_w) (h w)'
    t = t.transpose(0, 1, 3, 5, 2, 4)  # -> b, c, n_h, n_w, h, w
    return t.reshape(B, C * n_w * p, n_h * p)


if __name__ == "__main__":
    patch_size = 4
    stride = 4
    B, C, H, W = 2, 4, 16, 16

    key = jax.random.PRNGKey(0)
    x = jax.random.normal(key, (B, C, H, W), dtype=jnp.float32)

    ref = patchify_reference(x, patch_size)

    # Default path (whole channel dim fits one block: grid = (B, 1)).
    out = jax.block_until_ready(patchify_pallas(x, patch_size, stride))
    assert out.shape == (B, C * W, H), (out.shape, (B, C * W, H))
    assert out.dtype == x.dtype
    assert bool(jnp.array_equal(out, ref)), "Pallas output mismatch vs reference"

    # Force a small budget so ct < C, exercising the channel-grouped grid path.
    out2 = jax.block_until_ready(
        patchify_pallas(x, patch_size, stride, vmem_budget_bytes=8 * 1024)
    )
    assert bool(jnp.array_equal(out2, ref)), "Grouped-channel path mismatch"

    print("KERNEL_OK")
</pallas_src>

<mosaic_0001>
module attributes {stable_mosaic.version = 11 : i64} {
  func.func @_patchify_kernel(%arg0: i32, %arg1: i32, %arg2: memref<1x4x16x16xf32, #tpu.memory_space<vmem>>, %arg3: memref<1x4x16x16xf32, #tpu.memory_space<vmem>>) attributes {dimension_semantics = [#tpu.dimension_semantics<parallel>, #tpu.dimension_semantics<parallel>], iteration_bounds = array<i64: 2, 1>, scalar_prefetch = 0 : i64, scratch_operands = 0 : i64, tpu.core_type = #tpu.core_type<tc>, window_params = [{transform_indices = @transform_0, window_bounds = array<i64: 1, 4, 16, 16>}, {transform_indices = @transform_1, window_bounds = array<i64: 1, 4, 16, 16>}]} {
    %c0 = arith.constant 0 : index
    %c0_0 = arith.constant 0 : index
    %c0_1 = arith.constant 0 : index
    %c0_2 = arith.constant 0 : index
    %0 = vector.load %arg2[%c0, %c0_0, %c0_1, %c0_2] : memref<1x4x16x16xf32, #tpu.memory_space<vmem>>, vector<1x1x16x16xf32>
    %1 = vector.shape_cast %0 : vector<1x1x16x16xf32> to vector<16x16xf32>
    %2 = tpu.transpose %1, [1, 0] : vector<16x16xf32> -> vector<16x16xf32>
    %c0_3 = arith.constant 0 : index
    %c0_4 = arith.constant 0 : index
    %c0_5 = arith.constant 0 : index
    %c0_6 = arith.constant 0 : index
    %3 = vector.load %arg3[%c0_3, %c0_4, %c0_5, %c0_6] : memref<1x4x16x16xf32, #tpu.memory_space<vmem>>, vector<1x1x16x16xf32>
    %4 = vector.shape_cast %3 : vector<1x1x16x16xf32> to vector<16x16xf32>
    %5 = vector.shape_cast %2 : vector<16x16xf32> to vector<1x1x16x16xf32>
    tpu.vector_store %arg3[%c0_3, %c0_4, %c0_5, %c0_6], %5 {strides = array<i32>} : memref<1x4x16x16xf32, #tpu.memory_space<vmem>>, vector<1x1x16x16xf32>,
    %c0_7 = arith.constant 0 : index
    %c1 = arith.constant 1 : index
    %c0_8 = arith.constant 0 : index
    %c0_9 = arith.constant 0 : index
    %6 = vector.load %arg2[%c0_7, %c1, %c0_8, %c0_9] : memref<1x4x16x16xf32, #tpu.memory_space<vmem>>, vector<1x1x16x16xf32>
    %7 = vector.shape_cast %6 : vector<1x1x16x16xf32> to vector<16x16xf32>
    %8 = tpu.transpose %7, [1, 0] : vector<16x16xf32> -> vector<16x16xf32>
    %c0_10 = arith.constant 0 : index
    %c1_11 = arith.constant 1 : index
    %c0_12 = arith.constant 0 : index
    %c0_13 = arith.constant 0 : index
    %9 = vector.load %arg3[%c0_10, %c1_11, %c0_12, %c0_13] : memref<1x4x16x16xf32, #tpu.memory_space<vmem>>, vector<1x1x16x16xf32>
    %10 = vector.shape_cast %9 : vector<1x1x16x16xf32> to vector<16x16xf32>
    %11 = vector.shape_cast %8 : vector<16x16xf32> to vector<1x1x16x16xf32>
    tpu.vector_store %arg3[%c0_10, %c1_11, %c0_12, %c0_13], %11 {strides = array<i32>} : memref<1x4x16x16xf32, #tpu.memory_space<vmem>>, vector<1x1x16x16xf32>,
    %c0_14 = arith.constant 0 : index
    %c2 = arith.constant 2 : index
    %c0_15 = arith.constant 0 : index
    %c0_16 = arith.constant 0 : index
    %12 = vector.load %arg2[%c0_14, %c2, %c0_15, %c0_16] : memref<1x4x16x16xf32, #tpu.memory_space<vmem>>, vector<1x1x16x16xf32>
    %13 = vector.shape_cast %12 : vector<1x1x16x16xf32> to vector<16x16xf32>
    %14 = tpu.transpose %13, [1, 0] : vector<16x16xf32> -> vector<16x16xf32>
    %c0_17 = arith.constant 0 : index
    %c2_18 = arith.constant 2 : index
    %c0_19 = arith.constant 0 : index
    %c0_20 = arith.constant 0 : index
    %15 = vector.load %arg3[%c0_17, %c2_18, %c0_19, %c0_20] : memref<1x4x16x16xf32, #tpu.memory_space<vmem>>, vector<1x1x16x16xf32>
    %16 = vector.shape_cast %15 : vector<1x1x16x16xf32> to vector<16x16xf32>
    %17 = vector.shape_cast %14 : vector<16x16xf32> to vector<1x1x16x16xf32>
    tpu.vector_store %arg3[%c0_17, %c2_18, %c0_19, %c0_20], %17 {strides = array<i32>} : memref<1x4x16x16xf32, #tpu.memory_space<vmem>>, vector<1x1x16x16xf32>,
    %c0_21 = arith.constant 0 : index
    %c3 = arith.constant 3 : index
    %c0_22 = arith.constant 0 : index
    %c0_23 = arith.constant 0 : index
    %18 = vector.load %arg2[%c0_21, %c3, %c0_22, %c0_23] : memref<1x4x16x16xf32, #tpu.memory_space<vmem>>, vector<1x1x16x16xf32>
    %19 = vector.shape_cast %18 : vector<1x1x16x16xf32> to vector<16x16xf32>
    %20 = tpu.transpose %19, [1, 0] : vector<16x16xf32> -> vector<16x16xf32>
    %c0_24 = arith.constant 0 : index
    %c3_25 = arith.constant 3 : index
    %c0_26 = arith.constant 0 : index
    %c0_27 = arith.constant 0 : index
    %21 = vector.load %arg3[%c0_24, %c3_25, %c0_26, %c0_27] : memref<1x4x16x16xf32, #tpu.memory_space<vmem>>, vector<1x1x16x16xf32>
    %22 = vector.shape_cast %21 : vector<1x1x16x16xf32> to vector<16x16xf32>
    %23 = vector.shape_cast %20 : vector<16x16xf32> to vector<1x1x16x16xf32>
    tpu.vector_store %arg3[%c0_24, %c3_25, %c0_26, %c0_27], %23 {strides = array<i32>} : memref<1x4x16x16xf32, #tpu.memory_space<vmem>>, vector<1x1x16x16xf32>,
    return
  }
  func.func @transform_0(%arg0: i32, %arg1: i32) -> (i32, i32, i32, i32) {
    %c0_i32 = arith.constant 0 : i32
    %c0_i32_0 = arith.constant 0 : i32
    %c0_i32_1 = arith.constant 0 : i32
    return %arg0, %arg1, %c0_i32, %c0_i32_0 : i32, i32, i32, i32
  }
  func.func @transform_1(%arg0: i32, %arg1: i32) -> (i32, i32, i32, i32) {
    %c0_i32 = arith.constant 0 : i32
    %c0_i32_0 = arith.constant 0 : i32
    %c0_i32_1 = arith.constant 0 : i32
    return %arg0, %arg1, %c0_i32, %c0_i32_0 : i32, i32, i32, i32
  }
}

</mosaic_0001>

<llo_original>
// kernel: tpu_custom_call.1
$region0: #{tpu_custom_call.1}
  #allocation0 [shape = 'u32[]', space=smem, size = 0x4, offset = 0x4, fixed_abs, tag = 'smem constant byte address 0x4 - core index']
  #allocation1 [shape = 'u32[144,128]{1,0:T(1,128)}', space=vmem, size = 0x12000, scoped, tag = 'internal scratch']
  %s0 = inlined_call_operand.hbm [shape: f32[2,4,16,16], index: 0, kind: input, shape index: {}]
  %s1 = inlined_call_operand.hbm [shape: f32[2,4,16,16], index: 1, kind: output, shape index: {}]
  %s2 = sld [smem:[#allocation0]]
  $region41: #{tpu_custom_call.1} parent=0
    _
  %s4 = ssub.s32 1, %s2
  %s5 = scalar_select 0, %s4, %s2
  $region1: #{tpu_custom_call.1} parent=0
    #allocation2 [shape = 'u8[65536]{0}', space=vmem, size = 0x10000, scoped, tag = 'input window, operand 0']
    #allocation3 [shape = 's32[2]{0}', space=sflag, size = 0x8, scoped, tag = 'scoped memory for tpu_custom_call.1']
    #allocation4 [shape = 's32[2]{0}', space=sflag, size = 0x8, scoped, tag = 'scoped memory for tpu_custom_call.1']
    #allocation5 [shape = 'u8[65536]{0}', space=vmem, size = 0x10000, scoped, tag = 'output window, operand 0']
    %6 = vsyncpa [#allocation3], 0
    %s7 = scalar_lea.sflag [#allocation3], 1
    %8 = vsyncpa %s7, 0
    %9 = vsyncpa [#allocation4], 0
    %s10 = scalar_lea.sflag [#allocation4], 1
    %11 = vsyncpa %s10, 0
    loop: start=0, step=1, limit=4
    $region2: #{tpu_custom_call.1} parent=1 // loop_pre_header
      _
    $region3: #{tpu_custom_call.1} parent=1 // loop_header
      %s13 = sphi 0, %s17
      %p14 = scmp.ge.s32.totalorder %s13, 4
      %s20 = sphi 0, %s32
      %s21 = sphi 0, %s28
      %s22 = sphi 0, %s20
      %s23 = sphi 0, %s21
      %s24 = sphi 0, %s22
      %s25 = sphi 0, %s23
      %s37 = sphi 0, %s39
      %s40 = sphi 0, %s37
      %s41 = sphi 0, %s40
      %s57 = sphi 0, %s41
      %s65 = sphi 0, %s67
      %s68 = sphi 0, %s65
      %s69 = sphi 0, %s68
      %s85 = sphi 0, %s69
    $region4: #{tpu_custom_call.1} parent=1 // loop_header_branch
      %16 = sbr.rel (%p14) target = $region8
    $region5: #{tpu_custom_call.1} parent=1 // loop_body
      %s18 = ssub.s32 %s13, 1
      %s19 = ssub.s32 %s13, 2
      %s26 = sadd.s32 1, %s21
      %p27 = scmp.ge.s32.totalorder %s26, 1
      %s28 = scalar_select %p27, 0, %s26
      %s29 = sadd.s32 1, %s20
      %s30 = scalar_select %p27, %s29, %s20
      %p31 = scmp.ge.s32.totalorder %s30, 2
      %s32 = scalar_select %p31, 0, %s30
      %s33 = ssub.s32 %s20, %s32
      %s34 = ssub.s32 %s21, %s28
      %s35 = sor.u32 %s33, %s34
      %p36 = scmp.eq.s32.totalorder %s35, 0
      %s38 = sadd.s32 %s37, 1
      %s39 = scalar_select %p36, %s37, %s38
      %p42 = pneg %p36
      %p43 = scmp.eq.s32.totalorder %s13, 1
      %p44 = por %p42, %p43
      %p45 = scmp.ne.s32.totalorder %s37, %s40
      %p46 = scmp.eq.s32.totalorder %s13, 0
      %p47 = por %p45, %p46
      %p48 = scmp.ne.s32.totalorder %s37, %s40
      %p49 = scmp.eq.s32.totalorder %s18, 1
      %p50 = por %p48, %p49
      %p51 = scmp.ne.s32.totalorder %s40, %s41
      %p52 = scmp.eq.s32.totalorder %s18, 0
      %p53 = por %p51, %p52
      %p54 = scmp.ne.s32.totalorder %s40, %s41
      %p55 = scmp.eq.s32.totalorder %s19, 1
      %p56 = por %p54, %p55
      %p58 = scmp.ne.s32.totalorder %s41, %s57
      %p59 = scmp.eq.s32.totalorder %s19, 0
      %p60 = por %p58, %p59
      %s61 = ssub.s32 %s20, %s32
      %s62 = ssub.s32 %s21, %s28
      %s63 = sor.u32 %s61, %s62
      %p64 = scmp.eq.s32.totalorder %s63, 0
      %s66 = sadd.s32 %s65, 1
      %s67 = scalar_select %p64, %s65, %s66
      %p70 = pneg %p64
      %p71 = scmp.eq.s32.totalorder %s13, 1
      %p72 = por %p70, %p71
      %p73 = scmp.ne.s32.totalorder %s65, %s68
      %p74 = scmp.eq.s32.totalorder %s13, 0
      %p75 = por %p73, %p74
      %p76 = scmp.ne.s32.totalorder %s65, %s68
      %p77 = scmp.eq.s32.totalorder %s18, 1
      %p78 = por %p76, %p77
      %p79 = scmp.ne.s32.totalorder %s68, %s69
      %p80 = scmp.eq.s32.totalorder %s18, 0
      %p81 = por %p79, %p80
      %p82 = scmp.ne.s32.totalorder %s68, %s69
      %p83 = scmp.eq.s32.totalorder %s19, 1
      %p84 = por %p82, %p83
      %p86 = scmp.ne.s32.totalorder %s69, %s85
      %p87 = scmp.eq.s32.totalorder %s19, 0
      %p88 = por %p86, %p87
      %p89 = scmp.le.s32.totalorder 1, %s13
      %p90 = scmp.lt.s32.totalorder %s13, 3
      %p91 = pnand %p89, %p90
      %p92 = pneg %p91
      // Predicated region
      $region9: #{tpu_custom_call.1} parent=5 // pred_check
        _
      $region10: #{tpu_custom_call.1} parent=5 // pred_check_branch
        %94 = sbr.rel (%p91) target = $region12
      $region11: #{tpu_custom_call.1} parent=5 // pred_region
        %s95 = ssub.s32 %s13, 1
      $region12: #{tpu_custom_call.1} parent=5 // pred_fallthru
        _
      %p96 = scmp.lt.s32.totalorder %s13, 2
      // Predicated region
      $region13: #{tpu_custom_call.1} parent=5 // pred_check
        %p97 = pneg %p96
      $region14: #{tpu_custom_call.1} parent=5 // pred_check_branch
        %99 = sbr.rel (%p97) target = $region16
      $region15: #{tpu_custom_call.1} parent=5 // pred_region
        // Predicated region
        $region17: #{tpu_custom_call.1} parent=15 // pred_check
          %p100 = pneg %p47
        $region18: #{tpu_custom_call.1} parent=15 // pred_check_branch
          %102 = sbr.rel (%p100) target = $region20
        $region19: #{tpu_custom_call.1} parent=15 // pred_region
          %s103 = sand.u32 %s37, 1
          %s104 = scalar_lea.sflag [#allocation3], %s103
          %s105 = sand.u32 %s37, 1
          %s106 = smul.addr %s105, 64
          %s107 = scalar_lea.vmem [#allocation2], %s106
          %s108 = smul.u32 4, %s21
          %s110 = ssub.s32 1024, 1024
          %111 = vsyncadd %s104, %s110
          %s112 = smul.addr %s108, 2
          %s113 = smul.addr %s20, 8
          %s114 = sadd.s32 %s112, %s113
          %s115 = smul.addr %s114, 128
          %s116 = scalar_lea.hbm %s0, %s115
          %s117 = sshll.u32 %s107, 4
          %s118 = int_to_ptr.vmem [resolvable:$true] %s117
          %123 = dma.hbm_to_vmem [thread:$0]  %s116, 1024, %s118, %s104, 128, 128, 8
        $region20: #{tpu_custom_call.1} parent=15 // pred_fallthru
          _
      $region16: #{tpu_custom_call.1} parent=5 // pred_fallthru
        _
      %p124 = scmp.le.s32.totalorder 1, %s13
      %p125 = scmp.lt.s32.totalorder %s13, 3
      %p126 = pnand %p124, %p125
      %p127 = pneg %p126
      // Predicated region
      $region21: #{tpu_custom_call.1} parent=5 // pred_check
        _
      $region22: #{tpu_custom_call.1} parent=5 // pred_check_branch
        %129 = sbr.rel (%p126) target = $region24
      $region23: #{tpu_custom_call.1} parent=5 // pred_region
        %s130 = ssub.s32 %s13, 1
        %s131 = sand.u32 %s40, 1
        %s132 = scalar_lea.sflag [#allocation3], %s131
        %s133 = sand.u32 %s40, 1
        %s134 = smul.addr %s133, 64
        %s135 = scalar_lea.vmem [#allocation2], %s134
        // Predicated region
        $region25: #{tpu_custom_call.1} parent=23 // pred_check
          %p136 = pneg %p53
        $region26: #{tpu_custom_call.1} parent=23 // pred_check_branch
          %138 = sbr.rel (%p136) target = $region28
        $region27: #{tpu_custom_call.1} parent=23 // pred_region
          %139 = dma.done %s132, 1024
        $region28: #{tpu_custom_call.1} parent=23 // pred_fallthru
          _
        %s140 = sand.u32 %s40, 1
        %s141 = scalar_lea.sflag [#allocation3], %s140
        %s142 = sand.u32 %s40, 1
        %s143 = smul.addr %s142, 64
        %s144 = scalar_lea.vmem [#allocation2], %s143
        %p145 = pneg %p53
        %p146 = pneg %p50
        %p147 = pneg %p81
        %p148 = pneg %p78
        %s149 = sand.u32 %s68, 1
        %s150 = scalar_lea.sflag [#allocation4], %s149
        %s151 = sand.u32 %s68, 1
        %s152 = smul.addr %s151, 64
        %s153 = scalar_lea.vmem [#allocation5], %s152
        %s154 = smul.u32 4, %s23
        %s155 = smul.u32 4, %s23
        %v156 = vld [vmem:[%s135] sm:$0xff]
        %v157 = vld [vmem:[%s135 + $0x8] sm:$0xff]
        %158 = vxpose.xlu0.b32.start [1/16] %v156, 128
        %159 = vxpose.xlu0.b32.cont [2/16] %v157, 128
        %160 = vxpose.xlu0.b32.cont [3/16] 0.0, 128
        %161 = vxpose.xlu0.b32.cont [4/16] 0.0, 128
        %162 = vxpose.xlu0.b32.cont [5/16] 0.0, 128
        %163 = vxpose.xlu0.b32.cont [6/16] 0.0, 128
        %164 = vxpose.xlu0.b32.cont [7/16] 0.0, 128
        %165 = vxpose.xlu0.b32.cont [8/16] 0.0, 128
        %166 = vxpose.xlu0.b32.cont [9/16] 0.0, 128
        %167 = vxpose.xlu0.b32.cont [10/16] 0.0, 128
        %168 = vxpose.xlu0.b32.cont [11/16] 0.0, 128
        %169 = vxpose.xlu0.b32.cont [12/16] 0.0, 128
        %170 = vxpose.xlu0.b32.cont [13/16] 0.0, 128
        %171 = vxpose.xlu0.b32.cont [14/16] 0.0, 128
        %172 = vxpose.xlu0.b32.cont [15/16] 0.0, 128
        %173 = vxpose.xlu0.b32.end [16/16] 0.0, 128
        %v174 = vpop.trf.xlu0
        %v175 = vpop.trf.xlu0
        %v176 = vpop.trf.xlu0
        %v177 = vpop.trf.xlu0
        %v178 = vpop.trf.xlu0
        %v179 = vpop.trf.xlu0
        %v180 = vpop.trf.xlu0
        %v181 = vpop.trf.xlu0
        %v182 = vpop.trf.xlu0
        %v183 = vpop.trf.xlu0
        %v184 = vpop.trf.xlu0
        %v185 = vpop.trf.xlu0
        %v186 = vpop.trf.xlu0
        %v187 = vpop.trf.xlu0
        %v188 = vpop.trf.xlu0
        %v189 = vpop.trf.xlu0
        %vm190 = vcmask 130048
        %191 = vst.msk [vmem:[%s153] sm:$0xff] %vm190, %v174
        %192 = vst.msk [vmem:[%s153 + $0x8] sm:$0xff] %vm190, %v175
        %s193 = scalar_lea.vmem %s135, 16 [#allocation2]
        %v194 = vld [vmem:[%s193] sm:$0xff]
        %v195 = vld [vmem:[%s193 + $0x8] sm:$0xff]
        %196 = vxpose.xlu0.b32.start [1/16] %v194, 128
        %197 = vxpose.xlu0.b32.cont [2/16] %v195, 128
        %198 = vxpose.xlu0.b32.cont [3/16] 0.0, 128
        %199 = vxpose.xlu0.b32.cont [4/16] 0.0, 128
        %200 = vxpose.xlu0.b32.cont [5/16] 0.0, 128
        %201 = vxpose.xlu0.b32.cont [6/16] 0.0, 128
        %202 = vxpose.xlu0.b32.cont [7/16] 0.0, 128
        %203 = vxpose.xlu0.b32.cont [8/16] 0.0, 128
        %204 = vxpose.xlu0.b32.cont [9/16] 0.0, 128
        %205 = vxpose.xlu0.b32.cont [10/16] 0.0, 128
        %206 = vxpose.xlu0.b32.cont [11/16] 0.0, 128
        %207 = vxpose.xlu0.b32.cont [12/16] 0.0, 128
        %208 = vxpose.xlu0.b32.cont [13/16] 0.0, 128
        %209 = vxpose.xlu0.b32.cont [14/16] 0.0, 128
        %210 = vxpose.xlu0.b32.cont [15/16] 0.0, 128
        %211 = vxpose.xlu0.b32.end [16/16] 0.0, 128
        %v212 = vpop.trf.xlu0
        %v213 = vpop.trf.xlu0
        %v214 = vpop.trf.xlu0
        %v215 = vpop.trf.xlu0
        %v216 = vpop.trf.xlu0
        %v217 = vpop.trf.xlu0
        %v218 = vpop.trf.xlu0
        %v219 = vpop.trf.xlu0
        %v220 = vpop.trf.xlu0
        %v221 = vpop.trf.xlu0
        %v222 = vpop.trf.xlu0
        %v223 = vpop.trf.xlu0
        %v224 = vpop.trf.xlu0
        %v225 = vpop.trf.xlu0
        %v226 = vpop.trf.xlu0
        %v227 = vpop.trf.xlu0
        %s228 = scalar_lea.vmem %s153, 16 [#allocation5]
        %229 = vst.msk [vmem:[%s228] sm:$0xff] %vm190, %v212
        %230 = vst.msk [vmem:[%s228 + $0x8] sm:$0xff] %vm190, %v213
        %s231 = scalar_lea.vmem %s135, 32 [#allocation2]
        %v232 = vld [vmem:[%s231] sm:$0xff]
        %v233 = vld [vmem:[%s231 + $0x8] sm:$0xff]
        %234 = vxpose.xlu0.b32.start [1/16] %v232, 128
        %235 = vxpose.xlu0.b32.cont [2/16] %v233, 128
        %236 = vxpose.xlu0.b32.cont [3/16] 0.0, 128
        %237 = vxpose.xlu0.b32.cont [4/16] 0.0, 128
        %238 = vxpose.xlu0.b32.cont [5/16] 0.0, 128
        %239 = vxpose.xlu0.b32.cont [6/16] 0.0, 128
        %240 = vxpose.xlu0.b32.cont [7/16] 0.0, 128
        %241 = vxpose.xlu0.b32.cont [8/16] 0.0, 128
        %242 = vxpose.xlu0.b32.cont [9/16] 0.0, 128
        %243 = vxpose.xlu0.b32.cont [10/16] 0.0, 128
        %244 = vxpose.xlu0.b32.cont [11/16] 0.0, 128
        %245 = vxpose.xlu0.b32.cont [12/16] 0.0, 128
        %246 = vxpose.xlu0.b32.cont [13/16] 0.0, 128
        %247 = vxpose.xlu0.b32.cont [14/16] 0.0, 128
        %248 = vxpose.xlu0.b32.cont [15/16] 0.0, 128
        %249 = vxpose.xlu0.b32.end [16/16] 0.0, 128
        %v250 = vpop.trf.xlu0
        %v251 = vpop.trf.xlu0
        %v252 = vpop.trf.xlu0
        %v253 = vpop.trf.xlu0
        %v254 = vpop.trf.xlu0
        %v255 = vpop.trf.xlu0
        %v256 = vpop.trf.xlu0
        %v257 = vpop.trf.xlu0
        %v258 = vpop.trf.xlu0
        %v259 = vpop.trf.xlu0
        %v260 = vpop.trf.xlu0
        %v261 = vpop.trf.xlu0
        %v262 = vpop.trf.xlu0
        %v263 = vpop.trf.xlu0
        %v264 = vpop.trf.xlu0
        %v265 = vpop.trf.xlu0
        %s266 = scalar_lea.vmem %s153, 32 [#allocation5]
        %267 = vst.msk [vmem:[%s266] sm:$0xff] %vm190, %v250
        %268 = vst.msk [vmem:[%s266 + $0x8] sm:$0xff] %vm190, %v251
        %s269 = scalar_lea.vmem %s135, 48 [#allocation2]
        %v270 = vld [vmem:[%s269] sm:$0xff]
        %v271 = vld [vmem:[%s269 + $0x8] sm:$0xff]
        %272 = vxpose.xlu0.b32.start [1/16] %v270, 128
        %273 = vxpose.xlu0.b32.cont [2/16] %v271, 128
        %274 = vxpose.xlu0.b32.cont [3/16] 0.0, 128
        %275 = vxpose.xlu0.b32.cont [4/16] 0.0, 128
        %276 = vxpose.xlu0.b32.cont [5/16] 0.0, 128
        %277 = vxpose.xlu0.b32.cont [6/16] 0.0, 128
        %278 = vxpose.xlu0.b32.cont [7/16] 0.0, 128
        %279 = vxpose.xlu0.b32.cont [8/16] 0.0, 128
        %280 = vxpose.xlu0.b32.cont [9/16] 0.0, 128
        %281 = vxpose.xlu0.b32.cont [10/16] 0.0, 128
        %282 = vxpose.xlu0.b32.cont [11/16] 0.0, 128
        %283 = vxpose.xlu0.b32.cont [12/16] 0.0, 128
        %284 = vxpose.xlu0.b32.cont [13/16] 0.0, 128
        %285 = vxpose.xlu0.b32.cont [14/16] 0.0, 128
        %286 = vxpose.xlu0.b32.cont [15/16] 0.0, 128
        %287 = vxpose.xlu0.b32.end [16/16] 0.0, 128
        %v288 = vpop.trf.xlu0
        %v289 = vpop.trf.xlu0
        %v290 = vpop.trf.xlu0
        %v291 = vpop.trf.xlu0
        %v292 = vpop.trf.xlu0
        %v293 = vpop.trf.xlu0
        %v294 = vpop.trf.xlu0
        %v295 = vpop.trf.xlu0
        %v296 = vpop.trf.xlu0
        %v297 = vpop.trf.xlu0
        %v298 = vpop.trf.xlu0
        %v299 = vpop.trf.xlu0
        %v300 = vpop.trf.xlu0
        %v301 = vpop.trf.xlu0
        %v302 = vpop.trf.xlu0
        %v303 = vpop.trf.xlu0
        %s304 = scalar_lea.vmem %s153, 48 [#allocation5]
        %305 = vst.msk [vmem:[%s304] sm:$0xff] %vm190, %v288
        %306 = vst.msk [vmem:[%s304 + $0x8] sm:$0xff] %vm190, %v289
        %s307 = sand.u32 %s68, 1
        %s308 = scalar_lea.sflag [#allocation4], %s307
        %s309 = sand.u32 %s68, 1
        %s310 = smul.addr %s309, 64
        %s311 = scalar_lea.vmem [#allocation5], %s310
        // Predicated region
        $region29: #{tpu_custom_call.1} parent=23 // pred_check
          %p312 = pneg %p78
        $region30: #{tpu_custom_call.1} parent=23 // pred_check_branch
          %314 = sbr.rel (%p312) target = $region32
        $region31: #{tpu_custom_call.1} parent=23 // pred_region
          %s315 = smul.u32 4, %s23
          %s317 = ssub.s32 1024, 1024
          %318 = vsyncadd %s308, %s317
          %s319 = smul.addr %s315, 2
          %s320 = smul.addr %s22, 8
          %s321 = sadd.s32 %s319, %s320
          %s322 = smul.addr %s321, 128
          %s323 = scalar_lea.hbm %s1, %s322
          %s324 = sshll.u32 %s311, 4
          %s325 = int_to_ptr.vmem [resolvable:$true] %s324
          %330 = dma.vmem_to_hbm [thread:$0]  %s325, 1024, %s323, %s308, 128, 128, 8
        $region32: #{tpu_custom_call.1} parent=23 // pred_fallthru
          _
      $region24: #{tpu_custom_call.1} parent=5 // pred_fallthru
        _
      %p331 = scmp.le.s32.totalorder 2, %s13
      // Predicated region
      $region33: #{tpu_custom_call.1} parent=5 // pred_check
        %p332 = pneg %p331
      $region34: #{tpu_custom_call.1} parent=5 // pred_check_branch
        %334 = sbr.rel (%p332) target = $region36
      $region35: #{tpu_custom_call.1} parent=5 // pred_region
        %s335 = ssub.s32 %s13, 2
        // Predicated region
        $region37: #{tpu_custom_call.1} parent=35 // pred_check
          %p336 = pneg %p84
        $region38: #{tpu_custom_call.1} parent=35 // pred_check_branch
          %338 = sbr.rel (%p336) target = $region40
        $region39: #{tpu_custom_call.1} parent=35 // pred_region
          %s339 = sand.u32 %s69, 1
          %s340 = scalar_lea.sflag [#allocation4], %s339
          %s341 = sand.u32 %s69, 1
          %s342 = smul.addr %s341, 64
          %s343 = scalar_lea.vmem [#allocation5], %s342
          %344 = dma.done %s340, 1024
        $region40: #{tpu_custom_call.1} parent=35 // pred_fallthru
          _
      $region36: #{tpu_custom_call.1} parent=5 // pred_fallthru
        _
    $region6: #{tpu_custom_call.1} parent=1 // loop_footer
      %s17 = sadd.s32 1, %s13
    $region7: #{tpu_custom_call.1} parent=1 // loop_footer_branch
      %12 = sbr.rel target = $region3
    $region8: #{tpu_custom_call.1} parent=1 // loop_exit
      _
    %345 = vsyncpa [#allocation3], 1
    %s346 = scalar_lea.sflag [#allocation3], 1
    %347 = vsyncpa %s346, 1
    %348 = vsyncpa [#allocation4], 1
    %s349 = scalar_lea.sflag [#allocation4], 1
    %350 = vsyncpa %s349, 1

</llo_original>
